<compile_context>
chip_gen: v7x
topology: tpu7x:2x2x1
jax: 0.10.0
libtpu: 0.0.40
codegen_flags: <defaults>
</compile_context>

<pallas_src>
import functools

import jax
import jax.numpy as jnp
from jax.experimental import pallas as pl
from jax.experimental.pallas import tpu as pltpu


def _nll2d_kernel(logits_ref, tgt_ref, out_ref, *, tile, tiles_per_split, hw):
    # The (1, TILE) output block stays resident across the whole tile axis for
    # one (batch, split) pair; zero it on that pair's first tile.
    @pl.when(pl.program_id(2) == 0)
    def _():
        out_ref[...] = jnp.zeros_like(out_ref)

    x = logits_ref[...].astype(jnp.float32)                      # (C, T) f32 in-kernel
    # numerically stable log_softmax pieces over the channel (sublane) axis
    m = jnp.max(x, axis=0, keepdims=True)                        # (1, T)
    z = x - m
    lse = jnp.log(jnp.sum(jnp.exp(z), axis=0, keepdims=True))    # (1, T)

    # Gather z at the target channel via a sublane-iota compare+select; do NOT
    # materialize the full (C, T) logp = z - lse.
    tgt = tgt_ref[...]                                           # (1, T) int32
    ch = jax.lax.broadcasted_iota(jnp.int32, z.shape, 0)
    z_tgt = jnp.sum(jnp.where(ch == tgt, z, 0.0), axis=0, keepdims=True)   # (1, T)
    picked = z_tgt - lse                                         # log p[target]

    # In-kernel edge mask (replaces the old wrapper-side jnp.pad, which cost a
    # full extra HBM read+write pass): lanes whose global pixel index is >= hw
    # (partial edge block, or the clamped duplicate block of an odd split)
    # contribute 0.  Applied AFTER the lse subtraction so NaN/Inf from garbage
    # lanes cannot propagate into the accumulator.
    blk = pl.program_id(1) * tiles_per_split + pl.program_id(2)
    lane = jax.lax.broadcasted_iota(jnp.int32, picked.shape, 1)
    valid = blk * tile + lane < hw
    # pure VPU per-lane accumulation; no per-tile cross-lane reduce
    out_ref[...] -= jnp.where(valid, picked, 0.0)


def nll_loss_2d_mean(logits_nchw, targets_nhw, *,
                     logits_block_bytes=4 * 1024 * 1024,
                     pipeline_budget_bytes=24 * 1024 * 1024,
                     max_tile_hw=256 * 1024,
                     vmem_limit_bytes=48 * 1024 * 1024,
                     min_pallas_hw=2048):
    """mean over (N,H,W) of -log_softmax(logits, dim=1)[n, target[n,h,w], h, w].

    Equivalent to NLLLoss2d(size_average=True)(log_softmax(logits, 1), targets).
    Note: targets are assumed to lie in [0, C); unlike PyTorch, out-of-range
    targets do not raise (they contribute -lse for that pixel).
    """
    n, c, h, w = logits_nchw.shape
    hw = h * w

    if hw < min_pallas_hw:
        # Tiny scale: kernel launch + grid prologue would dominate; plain JAX wins.
        logp = jax.nn.log_softmax(logits_nchw.astype(jnp.float32), axis=1)
        picked = jnp.take_along_axis(
            logp, targets_nhw[:, None].astype(jnp.int32), axis=1)[:, 0]
        return -jnp.mean(picked)

    # Free views (no transpose / pad pass through HBM).  Keep logits in their
    # producer dtype (e.g. bf16); the kernel upcasts per block.
    x = logits_nchw.reshape(n, c, hw)
    t = targets_nhw.reshape(n, 1, hw).astype(jnp.int32)

    # --- tile sizing, in bytes (per perf review) -------------------------------
    itemsize = jnp.dtype(x.dtype).itemsize
    sub_pack = max(1, 32 // itemsize)           # sublanes per vreg: f32 -> 8, bf16 -> 16
    c_pad = pl.cdiv(c, sub_pack) * sub_pack     # VMEM layout pads C to a full vreg
    logits_lane_bytes = c_pad * itemsize        # bytes per lane of one logits block
    # Double-buffered per-lane footprint: 2x logits + 2x (1,T) int32 target blocks
    # (padded to 8 sublanes) + up to 2x (1,T) f32 output blocks.
    per_lane_bytes = 2 * logits_lane_bytes + 2 * 8 * 4 + 2 * 8 * 4
    tile = min(pipeline_budget_bytes // per_lane_bytes,   # v7x-safe pipelined footprint
               logits_block_bytes // logits_lane_bytes,   # ~4 MiB of logits per grid step
               max_tile_hw)
    tile = max(128, (tile // 128) * 128)                  # lane-dense multiple of 128
    tile = min(tile, pl.cdiv(hw, 128) * 128)

    num_tiles = pl.cdiv(hw, tile)
    # 2-way pixel-range split so v7x's second TensorCore has work even at N=1;
    # free on single-TC v5e/v6e (disjoint accumulator rows, masked duplicate
    # block when num_tiles is odd).
    split = 2 if num_tiles >= 2 else 1
    tiles_per_split = pl.cdiv(num_tiles, split)
    last_blk = num_tiles - 1                    # clamp target for the odd duplicate block

    def x_map(b, s, i):
        return (b, 0, jnp.minimum(s * tiles_per_split + i, last_blk))

    def t_map(b, s, i):
        return (b, 0, jnp.minimum(s * tiles_per_split + i, last_blk))

    kernel = functools.partial(_nll2d_kernel, tile=tile,
                               tiles_per_split=tiles_per_split, hw=hw)

    partial_sums = pl.pallas_call(
        kernel,
        out_shape=jax.ShapeDtypeStruct((n, split, 1, tile), jnp.float32),
        grid_spec=pltpu.PrefetchScalarGridSpec(
            num_scalar_prefetch=0,
            grid=(n, split, tiles_per_split),
            in_specs=[
                pl.BlockSpec((None, c, tile), x_map),
                pl.BlockSpec((None, 1, tile), t_map),
            ],
            out_specs=pl.BlockSpec((None, None, 1, tile),
                                   lambda b, s, i: (b, s, 0, 0)),
        ),
        compiler_params=pltpu.CompilerParams(
            dimension_semantics=("parallel", "parallel", "arbitrary"),
            vmem_limit_bytes=vmem_limit_bytes,
        ),
    )(x, t)

    # size_average=True -> mean over all (non-masked) pixels; the final
    # cross-lane reduction is done once in JAX (tree-reduced).
    return jnp.sum(partial_sums) / jnp.float32(n * hw)


def ms_cross_entropy_loss_2d(outputs, targets, weights, **nll_kwargs):
    """Faithful to the PyTorch forward, including the target-index quirk:
    scale 0 pairs with targets[0]; scale i+1 pairs with targets[i]."""
    loss = weights[0] * nll_loss_2d_mean(outputs[0], targets[0], **nll_kwargs)
    for i in range(len(weights) - 1):
        loss = loss + weights[i + 1] * nll_loss_2d_mean(outputs[i + 1], targets[i],
                                                        **nll_kwargs)
    return loss


if __name__ == "__main__":
    key = jax.random.PRNGKey(0)

    def ref_nll(o, t):
        logp = jax.nn.log_softmax(o.astype(jnp.float32), axis=1)
        picked = jnp.take_along_axis(logp, t[:, None, :, :], axis=1)[:, 0]
        return -jnp.mean(picked)

    def ref_ms(outputs, targets, weights):
        loss = weights[0] * ref_nll(outputs[0], targets[0])
        for i in range(len(weights) - 1):
            loss = loss + weights[i + 1] * ref_nll(outputs[i + 1], targets[i])
        return loss

    weights = (0.5, 0.3, 0.2)   # deterministic "parameters" of the loss module
    n_scales = len(weights)

    # 1) Full module forward through the Pallas kernel (hw = 56*56 = 3136).
    N, C, H, W = 2, 4, 56, 56
    keys = jax.random.split(key, 2 * n_scales + 4)
    outputs = [jax.random.normal(keys[s], (N, C, H, W), dtype=jnp.float32)
               for s in range(n_scales)]
    targets = [jax.random.randint(keys[n_scales + s], (N, H, W), 0, C, dtype=jnp.int32)
               for s in range(n_scales)]
    loss = jax.block_until_ready(ms_cross_entropy_loss_2d(outputs, targets, weights))
    ref = ref_ms(outputs, targets, weights)
    assert jnp.allclose(loss, ref, rtol=1e-5, atol=1e-5), (loss, ref)

    # 2) Multi-tile path: partial edge block, 2-way split, clamped duplicate block.
    x2 = jax.random.normal(keys[-4], (1, 4, 50, 50), dtype=jnp.float32)
    t2 = jax.random.randint(keys[-3], (1, 50, 50), 0, 4, dtype=jnp.int32)
    l2 = jax.block_until_ready(nll_loss_2d_mean(x2, t2, max_tile_hw=512))
    r2 = ref_nll(x2, t2)
    assert jnp.allclose(l2, r2, rtol=1e-5, atol=1e-5), (l2, r2)

    # 3) bf16 logits fed straight into the kernel (upcast happens per block).
    x3 = outputs[0].astype(jnp.bfloat16)
    l3 = jax.block_until_ready(nll_loss_2d_mean(x3, targets[0]))
    r3 = ref_nll(x3, targets[0])
    assert jnp.allclose(l3, r3, rtol=1e-4, atol=1e-4), (l3, r3)

    # 4) Tiny pyramid scales -> plain-JAX fallback path (hw = 64 < min_pallas_hw).
    outs_s = [jax.random.normal(keys[-2], (N, C, 8, 8), dtype=jnp.float32)
              for _ in range(n_scales)]
    tgts_s = [jax.random.randint(keys[-1], (N, 8, 8), 0, C, dtype=jnp.int32)
              for _ in range(n_scales)]
    ls = jax.block_until_ready(ms_cross_entropy_loss_2d(outs_s, tgts_s, weights))
    rs = ref_ms(outs_s, tgts_s, weights)
    assert jnp.allclose(ls, rs, rtol=1e-5, atol=1e-5), (ls, rs)

    print("KERNEL_OK")
</pallas_src>

<mosaic_0001>
module attributes {stable_mosaic.version = 11 : i64} {
  func.func @_nll2d_kernel(%arg0: i32, %arg1: i32, %arg2: i32, %arg3: memref<1x4x3200xf32, #tpu.memory_space<vmem>>, %arg4: memref<1x1x3200xi32, #tpu.memory_space<vmem>>, %arg5: memref<1x1x1x3200xf32, #tpu.memory_space<vmem>>) attributes {dimension_semantics = [#tpu.dimension_semantics<parallel>, #tpu.dimension_semantics<parallel>, #tpu.dimension_semantics<arbitrary>], iteration_bounds = array<i64: 2, 1, 1>, scalar_prefetch = 0 : i64, scratch_operands = 0 : i64, tpu.core_type = #tpu.core_type<tc>, window_params = [{transform_indices = @transform_0, window_bounds = array<i64: 1, 4, 3200>}, {transform_indices = @transform_1, window_bounds = array<i64: 1, 1, 3200>}, {transform_indices = @transform_2, window_bounds = array<i64: 1, 1, 1, 3200>}]} {
    %c0_i32 = arith.constant 0 : i32
    %0 = arith.cmpi eq, %arg2, %c0_i32 : i32
    %1 = arith.extui %0 : i1 to i32
    %c0_i32_0 = arith.constant 0 : i32
    %2 = arith.cmpi ne, %1, %c0_i32_0 : i32
    scf.if %2 {
      %cst_18 = arith.constant 0.000000e+00 : f32
      %39 = vector.broadcast %cst_18 : f32 to vector<1x3200xf32>
      %c0_19 = arith.constant 0 : index
      %c0_20 = arith.constant 0 : index
      %c0_21 = arith.constant 0 : index
      %c0_22 = arith.constant 0 : index
      %40 = vector.load %arg5[%c0_19, %c0_20, %c0_21, %c0_22] : memref<1x1x1x3200xf32, #tpu.memory_space<vmem>>, vector<1x1x1x3200xf32>
      %41 = vector.shape_cast %40 : vector<1x1x1x3200xf32> to vector<1x3200xf32>
      %42 = vector.shape_cast %39 : vector<1x3200xf32> to vector<1x1x1x3200xf32>
      tpu.vector_store %arg5[%c0_19, %c0_20, %c0_21, %c0_22], %42 {strides = array<i32>} : memref<1x1x1x3200xf32, #tpu.memory_space<vmem>>, vector<1x1x1x3200xf32>,
    } else {
    }
    %c0 = arith.constant 0 : index
    %c0_1 = arith.constant 0 : index
    %c0_2 = arith.constant 0 : index
    %3 = vector.load %arg3[%c0, %c0_1, %c0_2] : memref<1x4x3200xf32, #tpu.memory_space<vmem>>, vector<1x4x3200xf32>
    %4 = vector.shape_cast %3 : vector<1x4x3200xf32> to vector<4x3200xf32>
    %cst = arith.constant dense<0xFF800000> : vector<3200xf32>
    %5 = vector.multi_reduction <maximumf>, %4, %cst [0] : vector<4x3200xf32> to vector<3200xf32>
    %6 = vector.shape_cast %5 : vector<3200xf32> to vector<1x3200xf32>
    %7 = vector.broadcast %6 : vector<1x3200xf32> to vector<4x3200xf32>
    %8 = arith.subf %4, %7 : vector<4x3200xf32>
    %9 = math.exp %8 : vector<4x3200xf32>
    %cst_3 = arith.constant dense<0.000000e+00> : vector<3200xf32>
    %10 = vector.multi_reduction <add>, %9, %cst_3 [0] : vector<4x3200xf32> to vector<3200xf32>
    %11 = vector.shape_cast %10 : vector<3200xf32> to vector<1x3200xf32>
    %12 = math.log %11 : vector<1x3200xf32>
    %c0_4 = arith.constant 0 : index
    %c0_5 = arith.constant 0 : index
    %c0_6 = arith.constant 0 : index
    %13 = vector.load %arg4[%c0_4, %c0_5, %c0_6] : memref<1x1x3200xi32, #tpu.memory_space<vmem>>, vector<1x1x3200xi32>
    %14 = vector.shape_cast %13 : vector<1x1x3200xi32> to vector<1x3200xi32>
    %15 = tpu.iota {dimensions = array<i32: 0>} : vector<4x3200xi32>
    %16 = vector.broadcast %14 : vector<1x3200xi32> to vector<4x3200xi32>
    %17 = arith.cmpi eq, %15, %16 : vector<4x3200xi32>
    %cst_7 = arith.constant 0.000000e+00 : f32
    %18 = vector.broadcast %cst_7 : f32 to vector<4x3200xf32>
    %19 = arith.select %17, %8, %18 : vector<4x3200xi1>, vector<4x3200xf32>
    %cst_8 = arith.constant dense<0.000000e+00> : vector<3200xf32>
    %20 = vector.multi_reduction <add>, %19, %cst_8 [0] : vector<4x3200xf32> to vector<3200xf32>
    %21 = vector.shape_cast %20 : vector<3200xf32> to vector<1x3200xf32>
    %22 = arith.subf %21, %12 : vector<1x3200xf32>
    %c1_i32 = arith.constant 1 : i32
    %23 = arith.muli %arg1, %c1_i32 : i32
    %24 = arith.addi %23, %arg2 : i32
    %25 = tpu.iota {dimensions = array<i32: 1>} : vector<1x3200xi32>
    %c3200_i32 = arith.constant 3200 : i32
    %26 = arith.muli %24, %c3200_i32 : i32
    %27 = vector.broadcast %26 : i32 to vector<1x3200xi32>
    %28 = arith.addi %27, %25 : vector<1x3200xi32>
    %c3136_i32 = arith.constant 3136 : i32
    %29 = vector.broadcast %c3136_i32 : i32 to vector<1x3200xi32>
    %30 = arith.cmpi slt, %28, %29 : vector<1x3200xi32>
    %c0_9 = arith.constant 0 : index
    %c0_10 = arith.constant 0 : index
    %c0_11 = arith.constant 0 : index
    %c0_12 = arith.constant 0 : index
    %31 = vector.load %arg5[%c0_9, %c0_10, %c0_11, %c0_12] : memref<1x1x1x3200xf32, #tpu.memory_space<vmem>>, vector<1x1x1x3200xf32>
    %32 = vector.shape_cast %31 : vector<1x1x1x3200xf32> to vector<1x3200xf32>
    %cst_13 = arith.constant 0.000000e+00 : f32
    %33 = vector.broadcast %cst_13 : f32 to vector<1x3200xf32>
    %34 = arith.select %30, %22, %33 : vector<1x3200xi1>, vector<1x3200xf32>
    %35 = arith.subf %32, %34 : vector<1x3200xf32>
    %c0_14 = arith.constant 0 : index
    %c0_15 = arith.constant 0 : index
    %c0_16 = arith.constant 0 : index
    %c0_17 = arith.constant 0 : index
    %36 = vector.load %arg5[%c0_14, %c0_15, %c0_16, %c0_17] : memref<1x1x1x3200xf32, #tpu.memory_space<vmem>>, vector<1x1x1x3200xf32>
    %37 = vector.shape_cast %36 : vector<1x1x1x3200xf32> to vector<1x3200xf32>
    %38 = vector.shape_cast %35 : vector<1x3200xf32> to vector<1x1x1x3200xf32>
    tpu.vector_store %arg5[%c0_14, %c0_15, %c0_16, %c0_17], %38 {strides = array<i32>} : memref<1x1x1x3200xf32, #tpu.memory_space<vmem>>, vector<1x1x1x3200xf32>,
    return
  }
  func.func @transform_0(%arg0: i32, %arg1: i32, %arg2: i32) -> (i32, i32, i32) {
    %c1_i32 = arith.constant 1 : i32
    %0 = arith.muli %arg1, %c1_i32 : i32
    %1 = arith.addi %0, %arg2 : i32
    %c0_i32 = arith.constant 0 : i32
    %2 = arith.minsi %1, %c0_i32 : i32
    %c0_i32_0 = arith.constant 0 : i32
    %c0_i32_1 = arith.constant 0 : i32
    return %arg0, %c0_i32_0, %2 : i32, i32, i32
  }
  func.func @transform_1(%arg0: i32, %arg1: i32, %arg2: i32) -> (i32, i32, i32) {
    %c1_i32 = arith.constant 1 : i32
    %0 = arith.muli %arg1, %c1_i32 : i32
    %1 = arith.addi %0, %arg2 : i32
    %c0_i32 = arith.constant 0 : i32
    %2 = arith.minsi %1, %c0_i32 : i32
    %c0_i32_0 = arith.constant 0 : i32
    %c0_i32_1 = arith.constant 0 : i32
    return %arg0, %c0_i32_0, %2 : i32, i32, i32
  }
  func.func @transform_2(%arg0: i32, %arg1: i32, %arg2: i32) -> (i32, i32, i32, i32) {
    %c0_i32 = arith.constant 0 : i32
    %c0_i32_0 = arith.constant 0 : i32
    %c0_i32_1 = arith.constant 0 : i32
    return %arg0, %arg1, %c0_i32, %c0_i32_0 : i32, i32, i32, i32
  }
}

</mosaic_0001>

<llo_original>
// kernel: tpu_custom_call.1
$region0: #{tpu_custom_call.1}
  #allocation0 [shape = 'u32[]', space=smem, size = 0x4, offset = 0x4, fixed_abs, tag = 'smem constant byte address 0x4 - core index']
  #allocation1 [shape = 'u32[144,128]{1,0:T(1,128)}', space=vmem, size = 0x12000, scoped, tag = 'internal scratch']
  %s0 = inlined_call_operand.hbm [shape: f32[2,4,3136], index: 0, kind: input, shape index: {}]
  %s1 = inlined_call_operand.hbm [shape: s32[2,1,3136], index: 1, kind: input, shape index: {}]
  %s2 = inlined_call_operand.hbm [shape: f32[2,1,1,3200], index: 2, kind: output, shape index: {}]
  %s3 = sld [smem:[#allocation0]]
  $region53: #{tpu_custom_call.1} parent=0
    _
  %s5 = ssub.s32 1, %s3
  %s6 = scalar_select 0, %s5, %s3
  $region1: #{tpu_custom_call.1} parent=0
    #allocation2 [shape = 'u8[102400]{0}', space=vmem, size = 0x19000, scoped, tag = 'input window, operand 0']
    #allocation3 [shape = 's32[2]{0}', space=sflag, size = 0x8, scoped, tag = 'scoped memory for tpu_custom_call.1']
    #allocation4 [shape = 's32[2]{0}', space=sflag, size = 0x8, scoped, tag = 'scoped memory for tpu_custom_call.1']
    #allocation5 [shape = 'u8[25600]{0}', space=vmem, size = 0x6400, scoped, tag = 'input window, operand 1']
    #allocation6 [shape = 's32[2]{0}', space=sflag, size = 0x8, scoped, tag = 'scoped memory for tpu_custom_call.1']
    #allocation7 [shape = 'u8[25600]{0}', space=vmem, size = 0x6400, scoped, tag = 'output window, operand 0']
    %7 = vsyncpa [#allocation3], 0
    %s8 = scalar_lea.sflag [#allocation3], 1
    %9 = vsyncpa %s8, 0
    %10 = vsyncpa [#allocation6], 0
    %s11 = scalar_lea.sflag [#allocation6], 1
    %12 = vsyncpa %s11, 0
    %13 = vsyncpa [#allocation4], 0
    %s14 = scalar_lea.sflag [#allocation4], 1
    %15 = vsyncpa %s14, 0
    loop: start=0, step=1, limit=4
    $region2: #{tpu_custom_call.1} parent=1 // loop_pre_header
      _
    $region3: #{tpu_custom_call.1} parent=1 // loop_header
      %s17 = sphi 0, %s21
      %p18 = scmp.ge.s32.totalorder %s17, 4
      %s24 = sphi 0, %s43
      %s25 = sphi 0, %s39
      %s26 = sphi 0, %s35
      %s27 = sphi 0, %s24
      %s28 = sphi 0, %s25
      %s29 = sphi 0, %s26
      %s30 = sphi 0, %s27
      %s31 = sphi 0, %s28
      %s32 = sphi 0, %s29
      %s54 = sphi 0, %s56
      %s57 = sphi 0, %s54
      %s58 = sphi 0, %s57
      %s74 = sphi 0, %s58
      %s88 = sphi 0, %s90
      %s91 = sphi 0, %s88
      %s92 = sphi 0, %s91
      %s108 = sphi 0, %s92
      %s116 = sphi 0, %s118
      %s119 = sphi 0, %s116
      %s120 = sphi 0, %s119
      %s136 = sphi 0, %s120
    $region4: #{tpu_custom_call.1} parent=1 // loop_header_branch
      %20 = sbr.rel (%p18) target = $region8
    $region5: #{tpu_custom_call.1} parent=1 // loop_body
      %s22 = ssub.s32 %s17, 1
      %s23 = ssub.s32 %s17, 2
      %s33 = sadd.s32 1, %s26
      %p34 = scmp.ge.s32.totalorder %s33, 1
      %s35 = scalar_select %p34, 0, %s33
      %s36 = sadd.s32 1, %s25
      %s37 = scalar_select %p34, %s36, %s25
      %p38 = scmp.ge.s32.totalorder %s37, 1
      %s39 = scalar_select %p38, 0, %s37
      %s40 = sadd.s32 1, %s24
      %s41 = scalar_select %p38, %s40, %s24
      %p42 = scmp.ge.s32.totalorder %s41, 2
      %s43 = scalar_select %p42, 0, %s41
      %s44 = sadd.s32 %s25, %s26
      %p45 = scmp.lt.s32.totalorder %s44, 0
      %s46 = scalar_select %p45, %s44, 0
      %s47 = sadd.s32 %s39, %s35
      %p48 = scmp.lt.s32.totalorder %s47, 0
      %s49 = scalar_select %p48, %s47, 0
      %s50 = ssub.s32 %s24, %s43
      %s51 = ssub.s32 %s46, %s49
      %s52 = sor.u32 %s50, %s51
      %p53 = scmp.eq.s32.totalorder %s52, 0
      %s55 = sadd.s32 %s54, 1
      %s56 = scalar_select %p53, %s54, %s55
      %p59 = pneg %p53
      %p60 = scmp.eq.s32.totalorder %s17, 1
      %p61 = por %p59, %p60
      %p62 = scmp.ne.s32.totalorder %s54, %s57
      %p63 = scmp.eq.s32.totalorder %s17, 0
      %p64 = por %p62, %p63
      %p65 = scmp.ne.s32.totalorder %s54, %s57
      %p66 = scmp.eq.s32.totalorder %s22, 1
      %p67 = por %p65, %p66
      %p68 = scmp.ne.s32.totalorder %s57, %s58
      %p69 = scmp.eq.s32.totalorder %s22, 0
      %p70 = por %p68, %p69
      %p71 = scmp.ne.s32.totalorder %s57, %s58
      %p72 = scmp.eq.s32.totalorder %s23, 1
      %p73 = por %p71, %p72
      %p75 = scmp.ne.s32.totalorder %s58, %s74
      %p76 = scmp.eq.s32.totalorder %s23, 0
      %p77 = por %p75, %p76
      %s78 = sadd.s32 %s25, %s26
      %p79 = scmp.lt.s32.totalorder %s78, 0
      %s80 = scalar_select %p79, %s78, 0
      %s81 = sadd.s32 %s39, %s35
      %p82 = scmp.lt.s32.totalorder %s81, 0
      %s83 = scalar_select %p82, %s81, 0
      %s84 = ssub.s32 %s24, %s43
      %s85 = ssub.s32 %s80, %s83
      %s86 = sor.u32 %s84, %s85
      %p87 = scmp.eq.s32.totalorder %s86, 0
      %s89 = sadd.s32 %s88, 1
      %s90 = scalar_select %p87, %s88, %s89
      %p93 = pneg %p87
      %p94 = scmp.eq.s32.totalorder %s17, 1
      %p95 = por %p93, %p94
      %p96 = scmp.ne.s32.totalorder %s88, %s91
      %p97 = scmp.eq.s32.totalorder %s17, 0
      %p98 = por %p96, %p97
      %p99 = scmp.ne.s32.totalorder %s88, %s91
      %p100 = scmp.eq.s32.totalorder %s22, 1
      %p101 = por %p99, %p100
      %p102 = scmp.ne.s32.totalorder %s91, %s92
      %p103 = scmp.eq.s32.totalorder %s22, 0
      %p104 = por %p102, %p103
      %p105 = scmp.ne.s32.totalorder %s91, %s92
      %p106 = scmp.eq.s32.totalorder %s23, 1
      %p107 = por %p105, %p106
      %p109 = scmp.ne.s32.totalorder %s92, %s108
      %p110 = scmp.eq.s32.totalorder %s23, 0
      %p111 = por %p109, %p110
      %s112 = ssub.s32 %s24, %s43
      %s113 = ssub.s32 %s25, %s39
      %s114 = sor.u32 %s112, %s113
      %p115 = scmp.eq.s32.totalorder %s114, 0
      %s117 = sadd.s32 %s116, 1
      %s118 = scalar_select %p115, %s116, %s117
      %p121 = pneg %p115
      %p122 = scmp.eq.s32.totalorder %s17, 1
      %p123 = por %p121, %p122
      %p124 = scmp.ne.s32.totalorder %s116, %s119
      %p125 = scmp.eq.s32.totalorder %s17, 0
      %p126 = por %p124, %p125
      %p127 = scmp.ne.s32.totalorder %s116, %s119
      %p128 = scmp.eq.s32.totalorder %s22, 1
      %p129 = por %p127, %p128
      %p130 = scmp.ne.s32.totalorder %s119, %s120
      %p131 = scmp.eq.s32.totalorder %s22, 0
      %p132 = por %p130, %p131
      %p133 = scmp.ne.s32.totalorder %s119, %s120
      %p134 = scmp.eq.s32.totalorder %s23, 1
      %p135 = por %p133, %p134
      %p137 = scmp.ne.s32.totalorder %s120, %s136
      %p138 = scmp.eq.s32.totalorder %s23, 0
      %p139 = por %p137, %p138
      %p140 = scmp.le.s32.totalorder 1, %s17
      %p141 = scmp.lt.s32.totalorder %s17, 3
      %p142 = pnand %p140, %p141
      %p143 = pneg %p142
      // Predicated region
      $region9: #{tpu_custom_call.1} parent=5 // pred_check
        _
      $region10: #{tpu_custom_call.1} parent=5 // pred_check_branch
        %145 = sbr.rel (%p142) target = $region12
      $region11: #{tpu_custom_call.1} parent=5 // pred_region
        %s146 = ssub.s32 %s17, 1
      $region12: #{tpu_custom_call.1} parent=5 // pred_fallthru
        _
      %p147 = scmp.lt.s32.totalorder %s17, 2
      // Predicated region
      $region13: #{tpu_custom_call.1} parent=5 // pred_check
        %p148 = pneg %p147
      $region14: #{tpu_custom_call.1} parent=5 // pred_check_branch
        %150 = sbr.rel (%p148) target = $region16
      $region15: #{tpu_custom_call.1} parent=5 // pred_region
        // Predicated region
        $region17: #{tpu_custom_call.1} parent=15 // pred_check
          %p151 = pneg %p64
        $region18: #{tpu_custom_call.1} parent=15 // pred_check_branch
          %153 = sbr.rel (%p151) target = $region20
        $region19: #{tpu_custom_call.1} parent=15 // pred_region
          %s154 = sand.u32 %s54, 1
          %s155 = scalar_lea.sflag [#allocation3], %s154
          %s156 = sand.u32 %s54, 1
          %s157 = smul.addr %s156, 100
          %s158 = scalar_lea.vmem [#allocation2], %s157
          %s159 = sadd.s32 %s25, %s26
          %p160 = scmp.lt.s32.totalorder %s159, 0
          %s161 = scalar_select %p160, %s159, 0
          %s162 = smul.u32 25, %s161
          %s164 = ssub.s32 1600, 1600
          %165 = vsyncadd %s155, %s164
          %s166 = smul.addr %s24, 25
          %s167 = sadd.s32 %s162, %s166
          %s168 = smul.addr %s167, 64
          %s169 = scalar_lea.hbm %s0, %s168
          %s171 = sshll.u32 %s158, 4
          %s172 = int_to_ptr.vmem [resolvable:$true] %s171
          %174 = dma.hbm_to_vmem [thread:$0]  %s169, 1600, %s172, %s155
        $region20: #{tpu_custom_call.1} parent=15 // pred_fallthru
          _
        // Predicated region
        $region21: #{tpu_custom_call.1} parent=15 // pred_check
          %p175 = pneg %p98
        $region22: #{tpu_custom_call.1} parent=15 // pred_check_branch
          %177 = sbr.rel (%p175) target = $region24
        $region23: #{tpu_custom_call.1} parent=15 // pred_region
          %s178 = sand.u32 %s88, 1
          %s179 = scalar_lea.sflag [#allocation6], %s178
          %s180 = sand.u32 %s88, 1
          %s181 = smul.addr %s180, 25
          %s182 = scalar_lea.vmem [#allocation5], %s181
          %s183 = sadd.s32 %s25, %s26
          %p184 = scmp.lt.s32.totalorder %s183, 0
          %s185 = scalar_select %p184, %s183, 0
          %s186 = smul.u32 25, %s185
          %s188 = ssub.s32 400, 400
          %189 = vsyncadd %s179, %s188
          %s190 = smul.addr %s24, 25
          %s191 = sadd.s32 %s186, %s190
          %s192 = smul.addr %s191, 16
          %s193 = scalar_lea.hbm %s1, %s192
          %s195 = sshll.u32 %s182, 4
          %s196 = int_to_ptr.vmem [resolvable:$true] %s195
          %198 = dma.hbm_to_vmem [thread:$0]  %s193, 400, %s196, %s179
        $region24: #{tpu_custom_call.1} parent=15 // pred_fallthru
          _
      $region16: #{tpu_custom_call.1} parent=5 // pred_fallthru
        _
      %p199 = scmp.le.s32.totalorder 1, %s17
      %p200 = scmp.lt.s32.totalorder %s17, 3
      %p201 = pnand %p199, %p200
      %p202 = pneg %p201
      // Predicated region
      $region25: #{tpu_custom_call.1} parent=5 // pred_check
        _
      $region26: #{tpu_custom_call.1} parent=5 // pred_check_branch
        %204 = sbr.rel (%p201) target = $region28
      $region27: #{tpu_custom_call.1} parent=5 // pred_region
        %s205 = ssub.s32 %s17, 1
        %s206 = sand.u32 %s57, 1
        %s207 = scalar_lea.sflag [#allocation3], %s206
        %s208 = sand.u32 %s57, 1
        %s209 = smul.addr %s208, 100
        %s210 = scalar_lea.vmem [#allocation2], %s209
        // Predicated region
        $region29: #{tpu_custom_call.1} parent=27 // pred_check
          %p211 = pneg %p70
        $region30: #{tpu_custom_call.1} parent=27 // pred_check_branch
          %213 = sbr.rel (%p211) target = $region32
        $region31: #{tpu_custom_call.1} parent=27 // pred_region
          %214 = dma.done %s207, 1600
        $region32: #{tpu_custom_call.1} parent=27 // pred_fallthru
          _
        %s215 = sand.u32 %s91, 1
        %s216 = scalar_lea.sflag [#allocation6], %s215
        %s217 = sand.u32 %s91, 1
        %s218 = smul.addr %s217, 25
        %s219 = scalar_lea.vmem [#allocation5], %s218
        // Predicated region
        $region33: #{tpu_custom_call.1} parent=27 // pred_check
          %p220 = pneg %p104
        $region34: #{tpu_custom_call.1} parent=27 // pred_check_branch
          %222 = sbr.rel (%p220) target = $region36
        $region35: #{tpu_custom_call.1} parent=27 // pred_region
          %223 = dma.done %s216, 400
        $region36: #{tpu_custom_call.1} parent=27 // pred_fallthru
          _
        %s224 = sand.u32 %s57, 1
        %s225 = scalar_lea.sflag [#allocation3], %s224
        %s226 = sand.u32 %s57, 1
        %s227 = smul.addr %s226, 100
        %s228 = scalar_lea.vmem [#allocation2], %s227
        %p229 = pneg %p70
        %p230 = pneg %p67
        %s231 = sand.u32 %s91, 1
        %s232 = scalar_lea.sflag [#allocation6], %s231
        %s233 = sand.u32 %s91, 1
        %s234 = smul.addr %s233, 25
        %s235 = scalar_lea.vmem [#allocation5], %s234
        %p236 = pneg %p104
        %p237 = pneg %p101
        %p238 = pneg %p132
        %p239 = pneg %p129
        %s240 = sand.u32 %s119, 1
        %s241 = scalar_lea.sflag [#allocation4], %s240
        %s242 = sand.u32 %s119, 1
        %s243 = smul.addr %s242, 25
        %s244 = scalar_lea.vmem [#allocation7], %s243
        %s245 = sadd.s32 %s28, %s29
        %p246 = scmp.lt.s32.totalorder %s245, 0
        %s247 = scalar_select %p246, %s245, 0
        %s248 = smul.u32 25, %s247
        %s249 = sadd.s32 %s28, %s29
        %p250 = scmp.lt.s32.totalorder %s249, 0
        %s251 = scalar_select %p250, %s249, 0
        %s252 = smul.u32 25, %s251
        %p253 = scmp.eq.s32.totalorder %s29, 0
        // Predicated region
        $region37: #{tpu_custom_call.1} parent=27 // pred_check
          %p254 = pneg %p253
        $region38: #{tpu_custom_call.1} parent=27 // pred_check_branch
          %256 = sbr.rel (%p254) target = $region40
        $region39: #{tpu_custom_call.1} parent=27 // pred_region
          %257 = vst [vmem:[%s244] sm:$0xff] 0.0
          %258 = vst [vmem:[%s244 + $0x8] sm:$0xff] 0.0
          %259 = vst [vmem:[%s244 + $0x10] sm:$0xff] 0.0
          %v260 = vlaneseq
          %vm261 = vcmp.ge.s32.totalorder %v260, 0
          %vm262 = vcmp.lt.s32.totalorder %v260, 128
          %vm263 = vmand %vm261, %vm262
          %264 = vst.msk [vmem:[%s244 + $0x18] sm:$0x1] %vm263, 0.0
        $region40: #{tpu_custom_call.1} parent=27 // pred_fallthru
          _
        %v265 = vld [vmem:[%s210] sm:$0xff]
        %v266 = vld [vmem:[%s210 + $0x8] sm:$0xff]
        %v267 = vld [vmem:[%s210 + $0x10] sm:$0xff]
        %v268 = vld [vmem:[%s210 + $0x18] sm:$0xff]
        %v269 = vld [vmem:[%s210 + $0x20] sm:$0xff]
        %v270 = vld [vmem:[%s210 + $0x28] sm:$0xff]
        %v271 = vld [vmem:[%s210 + $0x30] sm:$0xff]
        %v272 = vld [vmem:[%s210 + $0x38] sm:$0xff]
        %v273 = vld [vmem:[%s210 + $0x40] sm:$0xff]
        %v274 = vld [vmem:[%s210 + $0x48] sm:$0xff]
        %v275 = vld [vmem:[%s210 + $0x50] sm:$0xff]
        %v276 = vld [vmem:[%s210 + $0x58] sm:$0xff]
        %v277 = vld [vmem:[%s210 + $0x60] sm:$0xf]
        %v290 = vcombine.high %v265, %v265
        %v291 = vcombine.high %v266, %v266
        %v292 = vcombine.high %v267, %v267
        %v293 = vcombine.high %v268, %v268
        %v294 = vcombine.high %v269, %v269
        %v295 = vcombine.high %v270, %v270
        %v296 = vcombine.high %v271, %v271
        %v297 = vcombine.high %v272, %v272
        %v298 = vcombine.high %v273, %v273
        %v299 = vcombine.high %v274, %v274
        %v300 = vcombine.high %v275, %v275
        %v301 = vcombine.high %v276, %v276
        %vm314 = vcmask 1043456
        %v315 = vsel %vm314, %v265, -inf
        %v316 = vrot.slane %v315, 4
        %v317 = vmax.f32 %v315, %v316
        %v318 = vrot.slane %v317, 2
        %v319 = vmax.f32 %v317, %v318
        %v320 = vrot.slane %v319, 1
        %v321 = vmax.f32 %v319, %v320
        %v322 = vsel %vm314, %v290, -inf
        %v323 = vrot.slane %v322, 4
        %v324 = vmax.f32 %v322, %v323
        %v325 = vrot.slane %v324, 2
        %v326 = vmax.f32 %v324, %v325
        %v327 = vrot.slane %v326, 1
        %v328 = vmax.f32 %v326, %v327
        %v329 = vsel %vm314, %v266, -inf
        %v330 = vrot.slane %v329, 4
        %v331 = vmax.f32 %v329, %v330
        %v332 = vrot.slane %v331, 2
        %v333 = vmax.f32 %v331, %v332
        %v334 = vrot.slane %v333, 1
        %v335 = vmax.f32 %v333, %v334
        %v336 = vsel %vm314, %v291, -inf
        %v337 = vrot.slane %v336, 4
        %v338 = vmax.f32 %v336, %v337
        %v339 = vrot.slane %v338, 2
        %v340 = vmax.f32 %v338, %v339
        %v341 = vrot.slane %v340, 1
        %v342 = vmax.f32 %v340, %v341
        %v343 = vsel %vm314, %v267, -inf
        %v344 = vrot.slane %v343, 4
        %v345 = vmax.f32 %v343, %v344
        %v346 = vrot.slane %v345, 2
        %v347 = vmax.f32 %v345, %v346
        %v348 = vrot.slane %v347, 1
        %v349 = vmax.f32 %v347, %v348
        %v350 = vsel %vm314, %v292, -inf
        %v351 = vrot.slane %v350, 4
        %v352 = vmax.f32 %v350, %v351
        %v353 = vrot.slane %v352, 2
        %v354 = vmax.f32 %v352, %v353
        %v355 = vrot.slane %v354, 1
        %v356 = vmax.f32 %v354, %v355
        %v357 = vsel %vm314, %v268, -inf
        %v358 = vrot.slane %v357, 4
        %v359 = vmax.f32 %v357, %v358
        %v360 = vrot.slane %v359, 2
        %v361 = vmax.f32 %v359, %v360
        %v362 = vrot.slane %v361, 1
        %v363 = vmax.f32 %v361, %v362
        %v364 = vsel %vm314, %v293, -inf
        %v365 = vrot.slane %v364, 4
        %v366 = vmax.f32 %v364, %v365
        %v367 = vrot.slane %v366, 2
        %v368 = vmax.f32 %v366, %v367
        %v369 = vrot.slane %v368, 1
        %v370 = vmax.f32 %v368, %v369
        %v371 = vsel %vm314, %v269, -inf
        %v372 = vrot.slane %v371, 4
        %v373 = vmax.f32 %v371, %v372
        %v374 = vrot.slane %v373, 2
        %v375 = vmax.f32 %v373, %v374
        %v376 = vrot.slane %v375, 1
        %v377 = vmax.f32 %v375, %v376
        %v378 = vsel %vm314, %v294, -inf
        %v379 = vrot.slane %v378, 4
        %v380 = vmax.f32 %v378, %v379
        %v381 = vrot.slane %v380, 2
        %v382 = vmax.f32 %v380, %v381
        %v383 = vrot.slane %v382, 1
        %v384 = vmax.f32 %v382, %v383
        %v385 = vsel %vm314, %v270, -inf
        %v386 = vrot.slane %v385, 4
        %v387 = vmax.f32 %v385, %v386
        %v388 = vrot.slane %v387, 2
        %v389 = vmax.f32 %v387, %v388
        %v390 = vrot.slane %v389, 1
        %v391 = vmax.f32 %v389, %v390
        %v392 = vsel %vm314, %v295, -inf
        %v393 = vrot.slane %v392, 4
        %v394 = vmax.f32 %v392, %v393
        %v395 = vrot.slane %v394, 2
        %v396 = vmax.f32 %v394, %v395
        %v397 = vrot.slane %v396, 1
        %v398 = vmax.f32 %v396, %v397
        %v399 = vsel %vm314, %v271, -inf
        %v400 = vrot.slane %v399, 4
        %v401 = vmax.f32 %v399, %v400
        %v402 = vrot.slane %v401, 2
        %v403 = vmax.f32 %v401, %v402
        %v404 = vrot.slane %v403, 1
        %v405 = vmax.f32 %v403, %v404
        %v406 = vsel %vm314, %v296, -inf
        %v407 = vrot.slane %v406, 4
        %v408 = vmax.f32 %v406, %v407
        %v409 = vrot.slane %v408, 2
        %v410 = vmax.f32 %v408, %v409
        %v411 = vrot.slane %v410, 1
        %v412 = vmax.f32 %v410, %v411
        %v413 = vsel %vm314, %v272, -inf
        %v414 = vrot.slane %v413, 4
        %v415 = vmax.f32 %v413, %v414
        %v416 = vrot.slane %v415, 2
        %v417 = vmax.f32 %v415, %v416
        %v418 = vrot.slane %v417, 1
        %v419 = vmax.f32 %v417, %v418
        %v420 = vsel %vm314, %v297, -inf
        %v421 = vrot.slane %v420, 4
        %v422 = vmax.f32 %v420, %v421
        %v423 = vrot.slane %v422, 2
        %v424 = vmax.f32 %v422, %v423
        %v425 = vrot.slane %v424, 1
        %v426 = vmax.f32 %v424, %v425
        %v427 = vsel %vm314, %v273, -inf
        %v428 = vrot.slane %v427, 4
        %v429 = vmax.f32 %v427, %v428
        %v430 = vrot.slane %v429, 2
        %v431 = vmax.f32 %v429, %v430
        %v432 = vrot.slane %v431, 1
        %v433 = vmax.f32 %v431, %v432
        %v434 = vsel %vm314, %v298, -inf
        %v435 = vrot.slane %v434, 4
        %v436 = vmax.f32 %v434, %v435
        %v437 = vrot.slane %v436, 2
        %v438 = vmax.f32 %v436, %v437
        %v439 = vrot.slane %v438, 1
        %v440 = vmax.f32 %v438, %v439
        %v441 = vsel %vm314, %v274, -inf
        %v442 = vrot.slane %v441, 4
        %v443 = vmax.f32 %v441, %v442
        %v444 = vrot.slane %v443, 2
        %v445 = vmax.f32 %v443, %v444
        %v446 = vrot.slane %v445, 1
        %v447 = vmax.f32 %v445, %v446
        %v448 = vsel %vm314, %v299, -inf
        %v449 = vrot.slane %v448, 4
        %v450 = vmax.f32 %v448, %v449
        %v451 = vrot.slane %v450, 2
        %v452 = vmax.f32 %v450, %v451
        %v453 = vrot.slane %v452, 1
        %v454 = vmax.f32 %v452, %v453
        %v455 = vsel %vm314, %v275, -inf
        %v456 = vrot.slane %v455, 4
        %v457 = vmax.f32 %v455, %v456
        %v458 = vrot.slane %v457, 2
        %v459 = vmax.f32 %v457, %v458
        %v460 = vrot.slane %v459, 1
        %v461 = vmax.f32 %v459, %v460
        %v462 = vsel %vm314, %v300, -inf
        %v463 = vrot.slane %v462, 4
        %v464 = vmax.f32 %v462, %v463
        %v465 = vrot.slane %v464, 2
        %v466 = vmax.f32 %v464, %v465
        %v467 = vrot.slane %v466, 1
        %v468 = vmax.f32 %v466, %v467
        %v469 = vsel %vm314, %v276, -inf
        %v470 = vrot.slane %v469, 4
        %v471 = vmax.f32 %v469, %v470
        %v472 = vrot.slane %v471, 2
        %v473 = vmax.f32 %v471, %v472
        %v474 = vrot.slane %v473, 1
        %v475 = vmax.f32 %v473, %v474
        %v476 = vsel %vm314, %v301, -inf
        %v477 = vrot.slane %v476, 4
        %v478 = vmax.f32 %v476, %v477
        %v479 = vrot.slane %v478, 2
        %v480 = vmax.f32 %v478, %v479
        %v481 = vrot.slane %v480, 1
        %v482 = vmax.f32 %v480, %v481
        %v483 = vsel %vm314, %v277, -inf
        %v484 = vrot.slane %v483, 4
        %v485 = vmax.f32 %v483, %v484
        %v486 = vrot.slane %v485, 2
        %v487 = vmax.f32 %v485, %v486
        %v488 = vrot.slane %v487, 1
        %v489 = vmax.f32 %v487, %v488
        %v514 = vcombine.low %v321, %v328
        %v515 = vcombine.low %v335, %v342
        %v516 = vcombine.low %v349, %v356
        %v517 = vcombine.low %v363, %v370
        %v518 = vcombine.low %v377, %v384
        %v519 = vcombine.low %v391, %v398
        %v520 = vcombine.low %v405, %v412
        %v521 = vcombine.low %v419, %v426
        %v522 = vcombine.low %v433, %v440
        %v523 = vcombine.low %v447, %v454
        %v524 = vcombine.low %v461, %v468
        %v525 = vcombine.low %v475, %v482
        %v538 = vsub.f32 %v265, %v514
        %v539 = vsub.f32 %v266, %v515
        %v540 = vsub.f32 %v267, %v516
        %v541 = vsub.f32 %v268, %v517
        %v542 = vsub.f32 %v269, %v518
        %v543 = vsub.f32 %v270, %v519
        %v544 = vsub.f32 %v271, %v520
        %v545 = vsub.f32 %v272, %v521
        %v546 = vsub.f32 %v273, %v522
        %v547 = vsub.f32 %v274, %v523
        %v548 = vsub.f32 %v275, %v524
        %v549 = vsub.f32 %v276, %v525
        %v550 = vsub.f32 %v277, %v489
        %v551 = vmul.f32 %v538, 1.442695
        %v552 = vpow.pop %v551
        %v553 = vmul.f32 %v539, 1.442695
        %v554 = vpow.pop %v553
        %v555 = vmul.f32 %v540, 1.442695
        %v556 = vpow.pop %v555
        %v557 = vmul.f32 %v541, 1.442695
        %v558 = vpow.pop %v557
        %v559 = vmul.f32 %v542, 1.442695
        %v560 = vpow.pop %v559
        %v561 = vmul.f32 %v543, 1.442695
        %v562 = vpow.pop %v561
        %v563 = vmul.f32 %v544, 1.442695
        %v564 = vpow.pop %v563
        %v565 = vmul.f32 %v545, 1.442695
        %v566 = vpow.pop %v565
        %v567 = vmul.f32 %v546, 1.442695
        %v568 = vpow.pop %v567
        %v569 = vmul.f32 %v547, 1.442695
        %v570 = vpow.pop %v569
        %v571 = vmul.f32 %v548, 1.442695
        %v572 = vpow.pop %v571
        %v573 = vmul.f32 %v549, 1.442695
        %v574 = vpow.pop %v573
        %v575 = vmul.f32 %v550, 1.442695
        %v576 = vpow.pop %v575
        %v589 = vcombine.high %v552, %v552
        %v590 = vcombine.high %v554, %v554
        %v591 = vcombine.high %v556, %v556
        %v592 = vcombine.high %v558, %v558
        %v593 = vcombine.high %v560, %v560
        %v594 = vcombine.high %v562, %v562
        %v595 = vcombine.high %v564, %v564
        %v596 = vcombine.high %v566, %v566
        %v597 = vcombine.high %v568, %v568
        %v598 = vcombine.high %v570, %v570
        %v599 = vcombine.high %v572, %v572
        %v600 = vcombine.high %v574, %v574
        %v613 = vsel %vm314, %v552, 0.0
        %v614 = vrot.slane %v613, 4
        %v615 = vadd.f32 %v613, %v614
        %v616 = vrot.slane %v615, 2
        %v617 = vadd.f32 %v615, %v616
        %v618 = vrot.slane %v617, 1
        %v619 = vadd.f32 %v617, %v618
        %v620 = vsel %vm314, %v589, 0.0
        %v621 = vrot.slane %v620, 4
        %v622 = vadd.f32 %v620, %v621
        %v623 = vrot.slane %v622, 2
        %v624 = vadd.f32 %v622, %v623
        %v625 = vrot.slane %v624, 1
        %v626 = vadd.f32 %v624, %v625
        %v627 = vsel %vm314, %v554, 0.0
        %v628 = vrot.slane %v627, 4
        %v629 = vadd.f32 %v627, %v628
        %v630 = vrot.slane %v629, 2
        %v631 = vadd.f32 %v629, %v630
        %v632 = vrot.slane %v631, 1
        %v633 = vadd.f32 %v631, %v632
        %v634 = vsel %vm314, %v590, 0.0
        %v635 = vrot.slane %v634, 4
        %v636 = vadd.f32 %v634, %v635
        %v637 = vrot.slane %v636, 2
        %v638 = vadd.f32 %v636, %v637
        %v639 = vrot.slane %v638, 1
        %v640 = vadd.f32 %v638, %v639
        %v641 = vsel %vm314, %v556, 0.0
        %v642 = vrot.slane %v641, 4
        %v643 = vadd.f32 %v641, %v642
        %v644 = vrot.slane %v643, 2
        %v645 = vadd.f32 %v643, %v644
        %v646 = vrot.slane %v645, 1
        %v647 = vadd.f32 %v645, %v646
        %v648 = vsel %vm314, %v591, 0.0
        %v649 = vrot.slane %v648, 4
        %v650 = vadd.f32 %v648, %v649
        %v651 = vrot.slane %v650, 2
        %v652 = vadd.f32 %v650, %v651
        %v653 = vrot.slane %v652, 1
        %v654 = vadd.f32 %v652, %v653
        %v655 = vsel %vm314, %v558, 0.0
        %v656 = vrot.slane %v655, 4
        %v657 = vadd.f32 %v655, %v656
        %v658 = vrot.slane %v657, 2
        %v659 = vadd.f32 %v657, %v658
        %v660 = vrot.slane %v659, 1
        %v661 = vadd.f32 %v659, %v660
        %v662 = vsel %vm314, %v592, 0.0
        %v663 = vrot.slane %v662, 4
        %v664 = vadd.f32 %v662, %v663
        %v665 = vrot.slane %v664, 2
        %v666 = vadd.f32 %v664, %v665
        %v667 = vrot.slane %v666, 1
        %v668 = vadd.f32 %v666, %v667
        %v669 = vsel %vm314, %v560, 0.0
        %v670 = vrot.slane %v669, 4
        %v671 = vadd.f32 %v669, %v670
        %v672 = vrot.slane %v671, 2
        %v673 = vadd.f32 %v671, %v672
        %v674 = vrot.slane %v673, 1
        %v675 = vadd.f32 %v673, %v674
        %v676 = vsel %vm314, %v593, 0.0
        %v677 = vrot.slane %v676, 4
        %v678 = vadd.f32 %v676, %v677
        %v679 = vrot.slane %v678, 2
        %v680 = vadd.f32 %v678, %v679
        %v681 = vrot.slane %v680, 1
        %v682 = vadd.f32 %v680, %v681
        %v683 = vsel %vm314, %v562, 0.0
        %v684 = vrot.slane %v683, 4
        %v685 = vadd.f32 %v683, %v684
        %v686 = vrot.slane %v685, 2
        %v687 = vadd.f32 %v685, %v686
        %v688 = vrot.slane %v687, 1
        %v689 = vadd.f32 %v687, %v688
        %v690 = vsel %vm314, %v594, 0.0
        %v691 = vrot.slane %v690, 4
        %v692 = vadd.f32 %v690, %v691
        %v693 = vrot.slane %v692, 2
        %v694 = vadd.f32 %v692, %v693
        %v695 = vrot.slane %v694, 1
        %v696 = vadd.f32 %v694, %v695
        %v697 = vsel %vm314, %v564, 0.0
        %v698 = vrot.slane %v697, 4
        %v699 = vadd.f32 %v697, %v698
        %v700 = vrot.slane %v699, 2
        %v701 = vadd.f32 %v699, %v700
        %v702 = vrot.slane %v701, 1
        %v703 = vadd.f32 %v701, %v702
        %v704 = vsel %vm314, %v595, 0.0
        %v705 = vrot.slane %v704, 4
        %v706 = vadd.f32 %v704, %v705
        %v707 = vrot.slane %v706, 2
        %v708 = vadd.f32 %v706, %v707
        %v709 = vrot.slane %v708, 1
        %v710 = vadd.f32 %v708, %v709
        %v711 = vsel %vm314, %v566, 0.0
        %v712 = vrot.slane %v711, 4
        %v713 = vadd.f32 %v711, %v712
        %v714 = vrot.slane %v713, 2
        %v715 = vadd.f32 %v713, %v714
        %v716 = vrot.slane %v715, 1
        %v717 = vadd.f32 %v715, %v716
        %v718 = vsel %vm314, %v596, 0.0
        %v719 = vrot.slane %v718, 4
        %v720 = vadd.f32 %v718, %v719
        %v721 = vrot.slane %v720, 2
        %v722 = vadd.f32 %v720, %v721
        %v723 = vrot.slane %v722, 1
        %v724 = vadd.f32 %v722, %v723
        %v725 = vsel %vm314, %v568, 0.0
        %v726 = vrot.slane %v725, 4
        %v727 = vadd.f32 %v725, %v726
        %v728 = vrot.slane %v727, 2
        %v729 = vadd.f32 %v727, %v728
        %v730 = vrot.slane %v729, 1
        %v731 = vadd.f32 %v729, %v730
        %v732 = vsel %vm314, %v597, 0.0
        %v733 = vrot.slane %v732, 4
        %v734 = vadd.f32 %v732, %v733
        %v735 = vrot.slane %v734, 2
        %v736 = vadd.f32 %v734, %v735
        %v737 = vrot.slane %v736, 1
        %v738 = vadd.f32 %v736, %v737
        %v739 = vsel %vm314, %v570, 0.0
        %v740 = vrot.slane %v739, 4
        %v741 = vadd.f32 %v739, %v740
        %v742 = vrot.slane %v741, 2
        %v743 = vadd.f32 %v741, %v742
        %v744 = vrot.slane %v743, 1
        %v745 = vadd.f32 %v743, %v744
        %v746 = vsel %vm314, %v598, 0.0
        %v747 = vrot.slane %v746, 4
        %v748 = vadd.f32 %v746, %v747
        %v749 = vrot.slane %v748, 2
        %v750 = vadd.f32 %v748, %v749
        %v751 = vrot.slane %v750, 1
        %v752 = vadd.f32 %v750, %v751
        %v753 = vsel %vm314, %v572, 0.0
        %v754 = vrot.slane %v753, 4
        %v755 = vadd.f32 %v753, %v754
        %v756 = vrot.slane %v755, 2
        %v757 = vadd.f32 %v755, %v756
        %v758 = vrot.slane %v757, 1
        %v759 = vadd.f32 %v757, %v758
        %v760 = vsel %vm314, %v599, 0.0
        %v761 = vrot.slane %v760, 4
        %v762 = vadd.f32 %v760, %v761
        %v763 = vrot.slane %v762, 2
        %v764 = vadd.f32 %v762, %v763
        %v765 = vrot.slane %v764, 1
        %v766 = vadd.f32 %v764, %v765
        %v767 = vsel %vm314, %v574, 0.0
        %v768 = vrot.slane %v767, 4
        %v769 = vadd.f32 %v767, %v768
        %v770 = vrot.slane %v769, 2
        %v771 = vadd.f32 %v769, %v770
        %v772 = vrot.slane %v771, 1
        %v773 = vadd.f32 %v771, %v772
        %v774 = vsel %vm314, %v600, 0.0
        %v775 = vrot.slane %v774, 4
        %v776 = vadd.f32 %v774, %v775
        %v777 = vrot.slane %v776, 2
        %v778 = vadd.f32 %v776, %v777
        %v779 = vrot.slane %v778, 1
        %v780 = vadd.f32 %v778, %v779
        %v781 = vsel %vm314, %v576, 0.0
        %v782 = vrot.slane %v781, 4
        %v783 = vadd.f32 %v781, %v782
        %v784 = vrot.slane %v783, 2
        %v785 = vadd.f32 %v783, %v784
        %v786 = vrot.slane %v785, 1
        %v787 = vadd.f32 %v785, %v786
        %v788 = vlog2.pop %v619
        %v789 = vmul.f32 %v788, 0.6931472
        %v790 = vlog2.pop %v626
        %v791 = vmul.f32 %v790, 0.6931472
        %v792 = vlog2.pop %v633
        %v793 = vmul.f32 %v792, 0.6931472
        %v794 = vlog2.pop %v640
        %v795 = vmul.f32 %v794, 0.6931472
        %v796 = vlog2.pop %v647
        %v797 = vmul.f32 %v796, 0.6931472
        %v798 = vlog2.pop %v654
        %v799 = vmul.f32 %v798, 0.6931472
        %v800 = vlog2.pop %v661
        %v801 = vmul.f32 %v800, 0.6931472
        %v802 = vlog2.pop %v668
        %v803 = vmul.f32 %v802, 0.6931472
        %v804 = vlog2.pop %v675
        %v805 = vmul.f32 %v804, 0.6931472
        %v806 = vlog2.pop %v682
        %v807 = vmul.f32 %v806, 0.6931472
        %v808 = vlog2.pop %v689
        %v809 = vmul.f32 %v808, 0.6931472
        %v810 = vlog2.pop %v696
        %v811 = vmul.f32 %v810, 0.6931472
        %v812 = vlog2.pop %v703
        %v813 = vmul.f32 %v812, 0.6931472
        %v814 = vlog2.pop %v710
        %v815 = vmul.f32 %v814, 0.6931472
        %v816 = vlog2.pop %v717
        %v817 = vmul.f32 %v816, 0.6931472
        %v818 = vlog2.pop %v724
        %v819 = vmul.f32 %v818, 0.6931472
        %v820 = vlog2.pop %v731
        %v821 = vmul.f32 %v820, 0.6931472
        %v822 = vlog2.pop %v738
        %v823 = vmul.f32 %v822, 0.6931472
        %v824 = vlog2.pop %v745
        %v825 = vmul.f32 %v824, 0.6931472
        %v826 = vlog2.pop %v752
        %v827 = vmul.f32 %v826, 0.6931472
        %v828 = vlog2.pop %v759
        %v829 = vmul.f32 %v828, 0.6931472
        %v830 = vlog2.pop %v766
        %v831 = vmul.f32 %v830, 0.6931472
        %v832 = vlog2.pop %v773
        %v833 = vmul.f32 %v832, 0.6931472
        %v834 = vlog2.pop %v780
        %v835 = vmul.f32 %v834, 0.6931472
        %v836 = vlog2.pop %v787
        %v837 = vmul.f32 %v836, 0.6931472
        %v838 = vld [vmem:[%s219] sm:$0xff]
        %v839 = vld [vmem:[%s219 + $0x8] sm:$0xff]
        %v840 = vld [vmem:[%s219 + $0x10] sm:$0xff]
        %v841 = vld [vmem:[%s219 + $0x18] sm:$0x1]
        %v842 = vlaneseq
        %v843 = vshrl.u32 %v842, 7
        %v844 = vlaneseq
        %v845 = vshrl.u32 %v844, 7
        %v846 = vsub.s32 0, %v845
        %v847 = vrot.slane %v838, %v846
        %v848 = vlaneseq
        %v849 = vshrl.u32 %v848, 7
        %v850 = vsub.s32 1, %v849
        %v851 = vrot.slane %v838, %v850
        %v852 = vlaneseq
        %v853 = vshrl.u32 %v852, 7
        %v854 = vsub.s32 2, %v853
        %v855 = vrot.slane %v838, %v854
        %v856 = vlaneseq
        %v857 = vshrl.u32 %v856, 7
        %v858 = vsub.s32 3, %v857
        %v859 = vrot.slane %v838, %v858
        %v860 = vlaneseq
        %v861 = vshrl.u32 %v860, 7
        %v862 = vsub.s32 4, %v861
        %v863 = vrot.slane %v838, %v862
        %v864 = vlaneseq
        %v865 = vshrl.u32 %v864, 7
        %v866 = vsub.s32 5, %v865
        %v867 = vrot.slane %v838, %v866
        %v868 = vlaneseq
        %v869 = vshrl.u32 %v868, 7
        %v870 = vsub.s32 6, %v869
        %v871 = vrot.slane %v838, %v870
        %v872 = vlaneseq
        %v873 = vshrl.u32 %v872, 7
        %v874 = vsub.s32 7, %v873
        %v875 = vrot.slane %v838, %v874
        %v876 = vlaneseq
        %v877 = vshrl.u32 %v876, 7
        %v878 = vsub.s32 0, %v877
        %v879 = vrot.slane %v839, %v878
        %v880 = vlaneseq
        %v881 = vshrl.u32 %v880, 7
        %v882 = vsub.s32 1, %v881
        %v883 = vrot.slane %v839, %v882
        %v884 = vlaneseq
        %v885 = vshrl.u32 %v884, 7
        %v886 = vsub.s32 2, %v885
        %v887 = vrot.slane %v839, %v886
        %v888 = vlaneseq
        %v889 = vshrl.u32 %v888, 7
        %v890 = vsub.s32 3, %v889
        %v891 = vrot.slane %v839, %v890
        %v892 = vlaneseq
        %v893 = vshrl.u32 %v892, 7
        %v894 = vsub.s32 4, %v893
        %v895 = vrot.slane %v839, %v894
        %v896 = vlaneseq
        %v897 = vshrl.u32 %v896, 7
        %v898 = vsub.s32 5, %v897
        %v899 = vrot.slane %v839, %v898
        %v900 = vlaneseq
        %v901 = vshrl.u32 %v900, 7
        %v902 = vsub.s32 6, %v901
        %v903 = vrot.slane %v839, %v902
        %v904 = vlaneseq
        %v905 = vshrl.u32 %v904, 7
        %v906 = vsub.s32 7, %v905
        %v907 = vrot.slane %v839, %v906
        %v908 = vlaneseq
        %v909 = vshrl.u32 %v908, 7
        %v910 = vsub.s32 0, %v909
        %v911 = vrot.slane %v840, %v910
        %v912 = vlaneseq
        %v913 = vshrl.u32 %v912, 7
        %v914 = vsub.s32 1, %v913
        %v915 = vrot.slane %v840, %v914
        %v916 = vlaneseq
        %v917 = vshrl.u32 %v916, 7
        %v918 = vsub.s32 2, %v917
        %v919 = vrot.slane %v840, %v918
        %v920 = vlaneseq
        %v921 = vshrl.u32 %v920, 7
        %v922 = vsub.s32 3, %v921
        %v923 = vrot.slane %v840, %v922
        %v924 = vlaneseq
        %v925 = vshrl.u32 %v924, 7
        %v926 = vsub.s32 4, %v925
        %v927 = vrot.slane %v840, %v926
        %v928 = vlaneseq
        %v929 = vshrl.u32 %v928, 7
        %v930 = vsub.s32 5, %v929
        %v931 = vrot.slane %v840, %v930
        %v932 = vlaneseq
        %v933 = vshrl.u32 %v932, 7
        %v934 = vsub.s32 6, %v933
        %v935 = vrot.slane %v840, %v934
        %v936 = vlaneseq
        %v937 = vshrl.u32 %v936, 7
        %v938 = vsub.s32 7, %v937
        %v939 = vrot.slane %v840, %v938
        %v940 = vlaneseq
        %v941 = vshrl.u32 %v940, 7
        %v942 = vsub.s32 0, %v941
        %v943 = vrot.slane %v841, %v942
        %vm944 = vcmp.eq.s32.totalorder %v843, %v847
        %vm945 = vcmp.eq.s32.totalorder %v843, %v851
        %vm946 = vcmp.eq.s32.totalorder %v843, %v855
        %vm947 = vcmp.eq.s32.totalorder %v843, %v859
        %vm948 = vcmp.eq.s32.totalorder %v843, %v863
        %vm949 = vcmp.eq.s32.totalorder %v843, %v867
        %vm950 = vcmp.eq.s32.totalorder %v843, %v871
        %vm951 = vcmp.eq.s32.totalorder %v843, %v875
        %vm952 = vcmp.eq.s32.totalorder %v843, %v879
        %vm953 = vcmp.eq.s32.totalorder %v843, %v883
        %vm954 = vcmp.eq.s32.totalorder %v843, %v887
        %vm955 = vcmp.eq.s32.totalorder %v843, %v891
        %vm956 = vcmp.eq.s32.totalorder %v843, %v895
        %vm957 = vcmp.eq.s32.totalorder %v843, %v899
        %vm958 = vcmp.eq.s32.totalorder %v843, %v903
        %vm959 = vcmp.eq.s32.totalorder %v843, %v907
        %vm960 = vcmp.eq.s32.totalorder %v843, %v911
        %vm961 = vcmp.eq.s32.totalorder %v843, %v915
        %vm962 = vcmp.eq.s32.totalorder %v843, %v919
        %vm963 = vcmp.eq.s32.totalorder %v843, %v923
        %vm964 = vcmp.eq.s32.totalorder %v843, %v927
        %vm965 = vcmp.eq.s32.totalorder %v843, %v931
        %vm966 = vcmp.eq.s32.totalorder %v843, %v935
        %vm967 = vcmp.eq.s32.totalorder %v843, %v939
        %vm968 = vcmp.eq.s32.totalorder %v843, %v943
        %v981 = vcombine.high %v538, %v538
        %v982 = vcombine.high %v539, %v539
        %v983 = vcombine.high %v540, %v540
        %v984 = vcombine.high %v541, %v541
        %v985 = vcombine.high %v542, %v542
        %v986 = vcombine.high %v543, %v543
        %v987 = vcombine.high %v544, %v544
        %v988 = vcombine.high %v545, %v545
        %v989 = vcombine.high %v546, %v546
        %v990 = vcombine.high %v547, %v547
        %v991 = vcombine.high %v548, %v548
        %v992 = vcombine.high %v549, %v549
        %v1005 = vsel %vm944, %v538, 0.0
        %v1006 = vsel %vm945, %v981, 0.0
        %v1007 = vsel %vm946, %v539, 0.0
        %v1008 = vsel %vm947, %v982, 0.0
        %v1009 = vsel %vm948, %v540, 0.0
        %v1010 = vsel %vm949, %v983, 0.0
        %v1011 = vsel %vm950, %v541, 0.0
        %v1012 = vsel %vm951, %v984, 0.0
        %v1013 = vsel %vm952, %v542, 0.0
        %v1014 = vsel %vm953, %v985, 0.0
        %v1015 = vsel %vm954, %v543, 0.0
        %v1016 = vsel %vm955, %v986, 0.0
        %v1017 = vsel %vm956, %v544, 0.0
        %v1018 = vsel %vm957, %v987, 0.0
        %v1019 = vsel %vm958, %v545, 0.0
        %v1020 = vsel %vm959, %v988, 0.0
        %v1021 = vsel %vm960, %v546, 0.0
        %v1022 = vsel %vm961, %v989, 0.0
        %v1023 = vsel %vm962, %v547, 0.0
        %v1024 = vsel %vm963, %v990, 0.0
        %v1025 = vsel %vm964, %v548, 0.0
        %v1026 = vsel %vm965, %v991, 0.0
        %v1027 = vsel %vm966, %v549, 0.0
        %v1028 = vsel %vm967, %v992, 0.0
        %v1029 = vsel %vm968, %v550, 0.0
        %v1030 = vsel %vm314, %v1005, 0.0
        %v1031 = vrot.slane %v1030, 4
        %v1032 = vadd.f32 %v1030, %v1031
        %v1033 = vrot.slane %v1032, 2
        %v1034 = vadd.f32 %v1032, %v1033
        %v1035 = vrot.slane %v1034, 1
        %v1036 = vadd.f32 %v1034, %v1035
        %v1037 = vsel %vm314, %v1006, 0.0
        %v1038 = vrot.slane %v1037, 4
        %v1039 = vadd.f32 %v1037, %v1038
        %v1040 = vrot.slane %v1039, 2
        %v1041 = vadd.f32 %v1039, %v1040
        %v1042 = vrot.slane %v1041, 1
        %v1043 = vadd.f32 %v1041, %v1042
        %v1044 = vsel %vm314, %v1007, 0.0
        %v1045 = vrot.slane %v1044, 4
        %v1046 = vadd.f32 %v1044, %v1045
        %v1047 = vrot.slane %v1046, 2
        %v1048 = vadd.f32 %v1046, %v1047
        %v1049 = vrot.slane %v1048, 1
        %v1050 = vadd.f32 %v1048, %v1049
        %v1051 = vsel %vm314, %v1008, 0.0
        %v1052 = vrot.slane %v1051, 4
        %v1053 = vadd.f32 %v1051, %v1052
        %v1054 = vrot.slane %v1053, 2
        %v1055 = vadd.f32 %v1053, %v1054
        %v1056 = vrot.slane %v1055, 1
        %v1057 = vadd.f32 %v1055, %v1056
        %v1058 = vsel %vm314, %v1009, 0.0
        %v1059 = vrot.slane %v1058, 4
        %v1060 = vadd.f32 %v1058, %v1059
        %v1061 = vrot.slane %v1060, 2
        %v1062 = vadd.f32 %v1060, %v1061
        %v1063 = vrot.slane %v1062, 1
        %v1064 = vadd.f32 %v1062, %v1063
        %v1065 = vsel %vm314, %v1010, 0.0
        %v1066 = vrot.slane %v1065, 4
        %v1067 = vadd.f32 %v1065, %v1066
        %v1068 = vrot.slane %v1067, 2
        %v1069 = vadd.f32 %v1067, %v1068
        %v1070 = vrot.slane %v1069, 1
        %v1071 = vadd.f32 %v1069, %v1070
        %v1072 = vsel %vm314, %v1011, 0.0
        %v1073 = vrot.slane %v1072, 4
        %v1074 = vadd.f32 %v1072, %v1073
        %v1075 = vrot.slane %v1074, 2
        %v1076 = vadd.f32 %v1074, %v1075
        %v1077 = vrot.slane %v1076, 1
        %v1078 = vadd.f32 %v1076, %v1077
        %v1079 = vsel %vm314, %v1012, 0.0
        %v1080 = vrot.slane %v1079, 4
        %v1081 = vadd.f32 %v1079, %v1080
        %v1082 = vrot.slane %v1081, 2
        %v1083 = vadd.f32 %v1081, %v1082
        %v1084 = vrot.slane %v1083, 1
        %v1085 = vadd.f32 %v1083, %v1084
        %v1086 = vsel %vm314, %v1013, 0.0
        %v1087 = vrot.slane %v1086, 4
        %v1088 = vadd.f32 %v1086, %v1087
        %v1089 = vrot.slane %v1088, 2
        %v1090 = vadd.f32 %v1088, %v1089
        %v1091 = vrot.slane %v1090, 1
        %v1092 = vadd.f32 %v1090, %v1091
        %v1093 = vsel %vm314, %v1014, 0.0
        %v1094 = vrot.slane %v1093, 4
        %v1095 = vadd.f32 %v1093, %v1094
        %v1096 = vrot.slane %v1095, 2
        %v1097 = vadd.f32 %v1095, %v1096
        %v1098 = vrot.slane %v1097, 1
        %v1099 = vadd.f32 %v1097, %v1098
        %v1100 = vsel %vm314, %v1015, 0.0
        %v1101 = vrot.slane %v1100, 4
        %v1102 = vadd.f32 %v1100, %v1101
        %v1103 = vrot.slane %v1102, 2
        %v1104 = vadd.f32 %v1102, %v1103
        %v1105 = vrot.slane %v1104, 1
        %v1106 = vadd.f32 %v1104, %v1105
        %v1107 = vsel %vm314, %v1016, 0.0
        %v1108 = vrot.slane %v1107, 4
        %v1109 = vadd.f32 %v1107, %v1108
        %v1110 = vrot.slane %v1109, 2
        %v1111 = vadd.f32 %v1109, %v1110
        %v1112 = vrot.slane %v1111, 1
        %v1113 = vadd.f32 %v1111, %v1112
        %v1114 = vsel %vm314, %v1017, 0.0
        %v1115 = vrot.slane %v1114, 4
        %v1116 = vadd.f32 %v1114, %v1115
        %v1117 = vrot.slane %v1116, 2
        %v1118 = vadd.f32 %v1116, %v1117
        %v1119 = vrot.slane %v1118, 1
        %v1120 = vadd.f32 %v1118, %v1119
        %v1121 = vsel %vm314, %v1018, 0.0
        %v1122 = vrot.slane %v1121, 4
        %v1123 = vadd.f32 %v1121, %v1122
        %v1124 = vrot.slane %v1123, 2
        %v1125 = vadd.f32 %v1123, %v1124
        %v1126 = vrot.slane %v1125, 1
        %v1127 = vadd.f32 %v1125, %v1126
        %v1128 = vsel %vm314, %v1019, 0.0
        %v1129 = vrot.slane %v1128, 4
        %v1130 = vadd.f32 %v1128, %v1129
        %v1131 = vrot.slane %v1130, 2
        %v1132 = vadd.f32 %v1130, %v1131
        %v1133 = vrot.slane %v1132, 1
        %v1134 = vadd.f32 %v1132, %v1133
        %v1135 = vsel %vm314, %v1020, 0.0
        %v1136 = vrot.slane %v1135, 4
        %v1137 = vadd.f32 %v1135, %v1136
        %v1138 = vrot.slane %v1137, 2
        %v1139 = vadd.f32 %v1137, %v1138
        %v1140 = vrot.slane %v1139, 1
        %v1141 = vadd.f32 %v1139, %v1140
        %v1142 = vsel %vm314, %v1021, 0.0
        %v1143 = vrot.slane %v1142, 4
        %v1144 = vadd.f32 %v1142, %v1143
        %v1145 = vrot.slane %v1144, 2
        %v1146 = vadd.f32 %v1144, %v1145
        %v1147 = vrot.slane %v1146, 1
        %v1148 = vadd.f32 %v1146, %v1147
        %v1149 = vsel %vm314, %v1022, 0.0
        %v1150 = vrot.slane %v1149, 4
        %v1151 = vadd.f32 %v1149, %v1150
        %v1152 = vrot.slane %v1151, 2
        %v1153 = vadd.f32 %v1151, %v1152
        %v1154 = vrot.slane %v1153, 1
        %v1155 = vadd.f32 %v1153, %v1154
        %v1156 = vsel %vm314, %v1023, 0.0
        %v1157 = vrot.slane %v1156, 4
        %v1158 = vadd.f32 %v1156, %v1157
        %v1159 = vrot.slane %v1158, 2
        %v1160 = vadd.f32 %v1158, %v1159
        %v1161 = vrot.slane %v1160, 1
        %v1162 = vadd.f32 %v1160, %v1161
        %v1163 = vsel %vm314, %v1024, 0.0
        %v1164 = vrot.slane %v1163, 4
        %v1165 = vadd.f32 %v1163, %v1164
        %v1166 = vrot.slane %v1165, 2
        %v1167 = vadd.f32 %v1165, %v1166
        %v1168 = vrot.slane %v1167, 1
        %v1169 = vadd.f32 %v1167, %v1168
        %v1170 = vsel %vm314, %v1025, 0.0
        %v1171 = vrot.slane %v1170, 4
        %v1172 = vadd.f32 %v1170, %v1171
        %v1173 = vrot.slane %v1172, 2
        %v1174 = vadd.f32 %v1172, %v1173
        %v1175 = vrot.slane %v1174, 1
        %v1176 = vadd.f32 %v1174, %v1175
        %v1177 = vsel %vm314, %v1026, 0.0
        %v1178 = vrot.slane %v1177, 4
        %v1179 = vadd.f32 %v1177, %v1178
        %v1180 = vrot.slane %v1179, 2
        %v1181 = vadd.f32 %v1179, %v1180
        %v1182 = vrot.slane %v1181, 1
        %v1183 = vadd.f32 %v1181, %v1182
        %v1184 = vsel %vm314, %v1027, 0.0
        %v1185 = vrot.slane %v1184, 4
        %v1186 = vadd.f32 %v1184, %v1185
        %v1187 = vrot.slane %v1186, 2
        %v1188 = vadd.f32 %v1186, %v1187
        %v1189 = vrot.slane %v1188, 1
        %v1190 = vadd.f32 %v1188, %v1189
        %v1191 = vsel %vm314, %v1028, 0.0
        %v1192 = vrot.slane %v1191, 4
        %v1193 = vadd.f32 %v1191, %v1192
        %v1194 = vrot.slane %v1193, 2
        %v1195 = vadd.f32 %v1193, %v1194
        %v1196 = vrot.slane %v1195, 1
        %v1197 = vadd.f32 %v1195, %v1196
        %v1198 = vsel %vm314, %v1029, 0.0
        %v1199 = vrot.slane %v1198, 4
        %v1200 = vadd.f32 %v1198, %v1199
        %v1201 = vrot.slane %v1200, 2
        %v1202 = vadd.f32 %v1200, %v1201
        %v1203 = vrot.slane %v1202, 1
        %v1204 = vadd.f32 %v1202, %v1203
        %v1205 = vsub.f32 %v1036, %v789
        %v1206 = vsub.f32 %v1043, %v791
        %v1207 = vsub.f32 %v1050, %v793
        %v1208 = vsub.f32 %v1057, %v795
        %v1209 = vsub.f32 %v1064, %v797
        %v1210 = vsub.f32 %v1071, %v799
        %v1211 = vsub.f32 %v1078, %v801
        %v1212 = vsub.f32 %v1085, %v803
        %v1213 = vsub.f32 %v1092, %v805
        %v1214 = vsub.f32 %v1099, %v807
        %v1215 = vsub.f32 %v1106, %v809
        %v1216 = vsub.f32 %v1113, %v811
        %v1217 = vsub.f32 %v1120, %v813
        %v1218 = vsub.f32 %v1127, %v815
        %v1219 = vsub.f32 %v1134, %v817
        %v1220 = vsub.f32 %v1141, %v819
        %v1221 = vsub.f32 %v1148, %v821
        %v1222 = vsub.f32 %v1155, %v823
        %v1223 = vsub.f32 %v1162, %v825
        %v1224 = vsub.f32 %v1169, %v827
        %v1225 = vsub.f32 %v1176, %v829
        %v1226 = vsub.f32 %v1183, %v831
        %v1227 = vsub.f32 %v1190, %v833
        %v1228 = vsub.f32 %v1197, %v835
        %v1229 = vsub.f32 %v1204, %v837
        %s1230 = sadd.s32 %s28, %s29
        %v1231 = vlaneseq
        %v1232 = vand.u32 %v1231, 127
        %v1233 = vadd.s32 %v1232, 128
        %v1234 = vadd.s32 %v1232, 256
        %v1235 = vadd.s32 %v1232, 384
        %v1236 = vadd.s32 %v1232, 512
        %v1237 = vadd.s32 %v1232, 640
        %v1238 = vadd.s32 %v1232, 768
        %v1239 = vadd.s32 %v1232, 896
        %v1240 = vadd.s32 %v1232, 1024
        %v1241 = vadd.s32 %v1232, 1152
        %v1242 = vadd.s32 %v1232, 1280
        %v1243 = vadd.s32 %v1232, 1408
        %v1244 = vadd.s32 %v1232, 1536
        %v1245 = vadd.s32 %v1232, 1664
        %v1246 = vadd.s32 %v1232, 1792
        %v1247 = vadd.s32 %v1232, 1920
        %v1248 = vadd.s32 %v1232, 2048
        %v1249 = vadd.s32 %v1232, 2176
        %v1250 = vadd.s32 %v1232, 2304
        %v1251 = vadd.s32 %v1232, 2432
        %v1252 = vadd.s32 %v1232, 2560
        %v1253 = vadd.s32 %v1232, 2688
        %v1254 = vadd.s32 %v1232, 2816
        %v1255 = vadd.s32 %v1232, 2944
        %v1256 = vadd.s32 %v1232, 3072
        %s1257 = smul.u32 %s1230, 3200
        %v1258 = vstv %s1257
        %v1259 = vadd.s32 %v1258, %v1232
        %v1260 = vadd.s32 %v1258, %v1233
        %v1261 = vadd.s32 %v1258, %v1234
        %v1262 = vadd.s32 %v1258, %v1235
        %v1263 = vadd.s32 %v1258, %v1236
        %v1264 = vadd.s32 %v1258, %v1237
        %v1265 = vadd.s32 %v1258, %v1238
        %v1266 = vadd.s32 %v1258, %v1239
        %v1267 = vadd.s32 %v1258, %v1240
        %v1268 = vadd.s32 %v1258, %v1241
        %v1269 = vadd.s32 %v1258, %v1242
        %v1270 = vadd.s32 %v1258, %v1243
        %v1271 = vadd.s32 %v1258, %v1244
        %v1272 = vadd.s32 %v1258, %v1245
        %v1273 = vadd.s32 %v1258, %v1246
        %v1274 = vadd.s32 %v1258, %v1247
        %v1275 = vadd.s32 %v1258, %v1248
        %v1276 = vadd.s32 %v1258, %v1249
        %v1277 = vadd.s32 %v1258, %v1250
        %v1278 = vadd.s32 %v1258, %v1251
        %v1279 = vadd.s32 %v1258, %v1252
        %v1280 = vadd.s32 %v1258, %v1253
        %v1281 = vadd.s32 %v1258, %v1254
        %v1282 = vadd.s32 %v1258, %v1255
        %v1283 = vadd.s32 %v1258, %v1256
        %vm1284 = vcmp.lt.s32.totalorder %v1259, 3136
        %vm1285 = vcmp.lt.s32.totalorder %v1260, 3136
        %vm1286 = vcmp.lt.s32.totalorder %v1261, 3136
        %vm1287 = vcmp.lt.s32.totalorder %v1262, 3136
        %vm1288 = vcmp.lt.s32.totalorder %v1263, 3136
        %vm1289 = vcmp.lt.s32.totalorder %v1264, 3136
        %vm1290 = vcmp.lt.s32.totalorder %v1265, 3136
        %vm1291 = vcmp.lt.s32.totalorder %v1266, 3136
        %vm1292 = vcmp.lt.s32.totalorder %v1267, 3136
        %vm1293 = vcmp.lt.s32.totalorder %v1268, 3136
        %vm1294 = vcmp.lt.s32.totalorder %v1269, 3136
        %vm1295 = vcmp.lt.s32.totalorder %v1270, 3136
        %vm1296 = vcmp.lt.s32.totalorder %v1271, 3136
        %vm1297 = vcmp.lt.s32.totalorder %v1272, 3136
        %vm1298 = vcmp.lt.s32.totalorder %v1273, 3136
        %vm1299 = vcmp.lt.s32.totalorder %v1274, 3136
        %vm1300 = vcmp.lt.s32.totalorder %v1275, 3136
        %vm1301 = vcmp.lt.s32.totalorder %v1276, 3136
        %vm1302 = vcmp.lt.s32.totalorder %v1277, 3136
        %vm1303 = vcmp.lt.s32.totalorder %v1278, 3136
        %vm1304 = vcmp.lt.s32.totalorder %v1279, 3136
        %vm1305 = vcmp.lt.s32.totalorder %v1280, 3136
        %vm1306 = vcmp.lt.s32.totalorder %v1281, 3136
        %vm1307 = vcmp.lt.s32.totalorder %v1282, 3136
        %vm1308 = vcmp.lt.s32.totalorder %v1283, 3136
        %v1309 = vld [vmem:[%s244] sm:$0xff]
        %v1310 = vld [vmem:[%s244 + $0x8] sm:$0xff]
        %v1311 = vld [vmem:[%s244 + $0x10] sm:$0xff]
        %v1312 = vld [vmem:[%s244 + $0x18] sm:$0x1]
        %v1313 = vsel %vm1284, %v1205, 0.0
        %v1314 = vsel %vm1285, %v1206, 0.0
        %v1315 = vsel %vm1286, %v1207, 0.0
        %v1316 = vsel %vm1287, %v1208, 0.0
        %v1317 = vsel %vm1288, %v1209, 0.0
        %v1318 = vsel %vm1289, %v1210, 0.0
        %v1319 = vsel %vm1290, %v1211, 0.0
        %v1320 = vsel %vm1291, %v1212, 0.0
        %v1321 = vsel %vm1292, %v1213, 0.0
        %v1322 = vsel %vm1293, %v1214, 0.0
        %v1323 = vsel %vm1294, %v1215, 0.0
        %v1324 = vsel %vm1295, %v1216, 0.0
        %v1325 = vsel %vm1296, %v1217, 0.0
        %v1326 = vsel %vm1297, %v1218, 0.0
        %v1327 = vsel %vm1298, %v1219, 0.0
        %v1328 = vsel %vm1299, %v1220, 0.0
        %v1329 = vsel %vm1300, %v1221, 0.0
        %v1330 = vsel %vm1301, %v1222, 0.0
        %v1331 = vsel %vm1302, %v1223, 0.0
        %v1332 = vsel %vm1303, %v1224, 0.0
        %v1333 = vsel %vm1304, %v1225, 0.0
        %v1334 = vsel %vm1305, %v1226, 0.0
        %v1335 = vsel %vm1306, %v1227, 0.0
        %v1336 = vsel %vm1307, %v1228, 0.0
        %v1337 = vsel %vm1308, %v1229, 0.0
        %v1363 = vcombine.low %v1313, %v1314
        %v1364 = vcombine.low %v1315, %v1316
        %v1365 = vcombine.low %v1317, %v1318
        %v1366 = vcombine.low %v1319, %v1320
        %v1368 = vunpack.c.l.s4 1966171168
        %v1369 = vunpack.c.0.s8 %v1368
        %v1370 = vlaneseq
        %v1371 = vshrl.u32 %v1370, 7
        %v1372 = vsub.s32 %v1369, %v1371
        %v1373 = vrot.slane %v1363, %v1372
        %v1375 = vunpack.c.l.s4 1966171168
        %v1376 = vunpack.c.0.s8 %v1375
        %v1377 = vlaneseq
        %v1378 = vshrl.u32 %v1377, 7
        %v1379 = vsub.s32 %v1376, %v1378
        %v1380 = vrot.slane %v1364, %v1379
        %v1382 = vunpack.c.l.s4 1966171168
        %v1383 = vunpack.c.0.s8 %v1382
        %v1384 = vlaneseq
        %v1385 = vshrl.u32 %v1384, 7
        %v1386 = vsub.s32 %v1383, %v1385
        %v1387 = vrot.slane %v1365, %v1386
        %v1389 = vunpack.c.l.s4 1966171168
        %v1390 = vunpack.c.0.s8 %v1389
        %v1391 = vlaneseq
        %v1392 = vshrl.u32 %v1391, 7
        %v1393 = vsub.s32 %v1390, %v1392
        %v1394 = vrot.slane %v1366, %v1393
        %v1395 = vcombine.low %v1373, %v1380
        %v1396 = vcombine.low %v1387, %v1394
        %v1398 = vunpack.c.l.s4 1966171168
        %v1399 = vunpack.c.0.s8 %v1398
        %v1400 = vlaneseq
        %v1401 = vshrl.u32 %v1400, 7
        %v1402 = vsub.s32 %v1399, %v1401
        %v1403 = vrot.slane %v1395, %v1402
        %v1405 = vunpack.c.l.s4 1966171168
        %v1406 = vunpack.c.0.s8 %v1405
        %v1407 = vlaneseq
        %v1408 = vshrl.u32 %v1407, 7
        %v1409 = vsub.s32 %v1406, %v1408
        %v1410 = vrot.slane %v1396, %v1409
        %v1411 = vcombine.low %v1403, %v1410
        %v1412 = vcombine.low %v1321, %v1322
        %v1413 = vcombine.low %v1323, %v1324
        %v1414 = vcombine.low %v1325, %v1326
        %v1415 = vcombine.low %v1327, %v1328
        %v1417 = vunpack.c.l.s4 1966171168
        %v1418 = vunpack.c.0.s8 %v1417
        %v1419 = vlaneseq
        %v1420 = vshrl.u32 %v1419, 7
        %v1421 = vsub.s32 %v1418, %v1420
        %v1422 = vrot.slane %v1412, %v1421
        %v1424 = vunpack.c.l.s4 1966171168
        %v1425 = vunpack.c.0.s8 %v1424
        %v1426 = vlaneseq
        %v1427 = vshrl.u32 %v1426, 7
        %v1428 = vsub.s32 %v1425, %v1427
        %v1429 = vrot.slane %v1413, %v1428
        %v1431 = vunpack.c.l.s4 1966171168
        %v1432 = vunpack.c.0.s8 %v1431
        %v1433 = vlaneseq
        %v1434 = vshrl.u32 %v1433, 7
        %v1435 = vsub.s32 %v1432, %v1434
        %v1436 = vrot.slane %v1414, %v1435
        %v1438 = vunpack.c.l.s4 1966171168
        %v1439 = vunpack.c.0.s8 %v1438
        %v1440 = vlaneseq
        %v1441 = vshrl.u32 %v1440, 7
        %v1442 = vsub.s32 %v1439, %v1441
        %v1443 = vrot.slane %v1415, %v1442
        %v1444 = vcombine.low %v1422, %v1429
        %v1445 = vcombine.low %v1436, %v1443
        %v1447 = vunpack.c.l.s4 1966171168
        %v1448 = vunpack.c.0.s8 %v1447
        %v1449 = vlaneseq
        %v1450 = vshrl.u32 %v1449, 7
        %v1451 = vsub.s32 %v1448, %v1450
        %v1452 = vrot.slane %v1444, %v1451
        %v1454 = vunpack.c.l.s4 1966171168
        %v1455 = vunpack.c.0.s8 %v1454
        %v1456 = vlaneseq
        %v1457 = vshrl.u32 %v1456, 7
        %v1458 = vsub.s32 %v1455, %v1457
        %v1459 = vrot.slane %v1445, %v1458
        %v1460 = vcombine.low %v1452, %v1459
        %v1461 = vcombine.low %v1329, %v1330
        %v1462 = vcombine.low %v1331, %v1332
        %v1463 = vcombine.low %v1333, %v1334
        %v1464 = vcombine.low %v1335, %v1336
        %v1466 = vunpack.c.l.s4 1966171168
        %v1467 = vunpack.c.0.s8 %v1466
        %v1468 = vlaneseq
        %v1469 = vshrl.u32 %v1468, 7
        %v1470 = vsub.s32 %v1467, %v1469
        %v1471 = vrot.slane %v1461, %v1470
        %v1473 = vunpack.c.l.s4 1966171168
        %v1474 = vunpack.c.0.s8 %v1473
        %v1475 = vlaneseq
        %v1476 = vshrl.u32 %v1475, 7
        %v1477 = vsub.s32 %v1474, %v1476
        %v1478 = vrot.slane %v1462, %v1477
        %v1480 = vunpack.c.l.s4 1966171168
        %v1481 = vunpack.c.0.s8 %v1480
        %v1482 = vlaneseq
        %v1483 = vshrl.u32 %v1482, 7
        %v1484 = vsub.s32 %v1481, %v1483
        %v1485 = vrot.slane %v1463, %v1484
        %v1487 = vunpack.c.l.s4 1966171168
        %v1488 = vunpack.c.0.s8 %v1487
        %v1489 = vlaneseq
        %v1490 = vshrl.u32 %v1489, 7
        %v1491 = vsub.s32 %v1488, %v1490
        %v1492 = vrot.slane %v1464, %v1491
        %v1493 = vcombine.low %v1471, %v1478
        %v1494 = vcombine.low %v1485, %v1492
        %v1496 = vunpack.c.l.s4 1966171168
        %v1497 = vunpack.c.0.s8 %v1496
        %v1498 = vlaneseq
        %v1499 = vshrl.u32 %v1498, 7
        %v1500 = vsub.s32 %v1497, %v1499
        %v1501 = vrot.slane %v1493, %v1500
        %v1503 = vunpack.c.l.s4 1966171168
        %v1504 = vunpack.c.0.s8 %v1503
        %v1505 = vlaneseq
        %v1506 = vshrl.u32 %v1505, 7
        %v1507 = vsub.s32 %v1504, %v1506
        %v1508 = vrot.slane %v1494, %v1507
        %v1509 = vcombine.low %v1501, %v1508
        %v1511 = vunpack.c.l.s4 1966171168
        %v1512 = vunpack.c.0.s8 %v1511
        %v1513 = vlaneseq
        %v1514 = vshrl.u32 %v1513, 7
        %v1515 = vsub.s32 %v1512, %v1514
        %v1516 = vrot.slane %v1337, %v1515
        %v1518 = vunpack.c.l.s4 1966171168
        %v1519 = vunpack.c.0.s8 %v1518
        %v1520 = vlaneseq
        %v1521 = vshrl.u32 %v1520, 7
        %v1522 = vsub.s32 %v1519, %v1521
        %v1523 = vrot.slane %v1516, %v1522
        %v1528 = vsub.f32 %v1309, %v1411
        %v1529 = vsub.f32 %v1310, %v1460
        %v1530 = vsub.f32 %v1311, %v1509
        %v1531 = vsub.f32 %v1312, %v1523
        %1532 = vst [vmem:[%s244] sm:$0xff] %v1528
        %1533 = vst [vmem:[%s244 + $0x8] sm:$0xff] %v1529
        %1534 = vst [vmem:[%s244 + $0x10] sm:$0xff] %v1530
        %v1535 = vlaneseq
        %vm1536 = vcmp.ge.s32.totalorder %v1535, 0
        %vm1537 = vcmp.lt.s32.totalorder %v1535, 128
        %vm1538 = vmand %vm1536, %vm1537
        %1539 = vst.msk [vmem:[%s244 + $0x18] sm:$0x1] %vm1538, %v1531
        %s1540 = sand.u32 %s119, 1
        %s1541 = scalar_lea.sflag [#allocation4], %s1540
        %s1542 = sand.u32 %s119, 1
        %s1543 = smul.addr %s1542, 25
        %s1544 = scalar_lea.vmem [#allocation7], %s1543
        // Predicated region
        $region41: #{tpu_custom_call.1} parent=27 // pred_check
          %p1545 = pneg %p129
        $region42: #{tpu_custom_call.1} parent=27 // pred_check_branch
          %1547 = sbr.rel (%p1545) target = $region44
        $region43: #{tpu_custom_call.1} parent=27 // pred_region
          %s1549 = ssub.s32 400, 400
          %1550 = vsyncadd %s1541, %s1549
          %s1551 = smul.addr %s28, 25
          %s1552 = smul.addr %s27, 25
          %s1553 = sadd.s32 %s1551, %s1552
          %s1554 = smul.addr %s1553, 16
          %s1555 = scalar_lea.hbm %s2, %s1554
          %s1557 = sshll.u32 %s1544, 4
          %s1558 = int_to_ptr.vmem [resolvable:$true] %s1557
          %1560 = dma.vmem_to_hbm [thread:$0]  %s1558, 400, %s1555, %s1541
        $region44: #{tpu_custom_call.1} parent=27 // pred_fallthru
          _
      $region28: #{tpu_custom_call.1} parent=5 // pred_fallthru
        _
      %p1561 = scmp.le.s32.totalorder 2, %s17
      // Predicated region
      $region45: #{tpu_custom_call.1} parent=5 // pred_check
        %p1562 = pneg %p1561
      $region46: #{tpu_custom_call.1} parent=5 // pred_check_branch
        %1564 = sbr.rel (%p1562) target = $region48
      $region47: #{tpu_custom_call.1} parent=5 // pred_region
        %s1565 = ssub.s32 %s17, 2
        // Predicated region
        $region49: #{tpu_custom_call.1} parent=47 // pred_check
          %p1566 = pneg %p135
        $region50: #{tpu_custom_call.1} parent=47 // pred_check_branch
          %1568 = sbr.rel (%p1566) target = $region52
        $region51: #{tpu_custom_call.1} parent=47 // pred_region
          %s1569 = sand.u32 %s120, 1
          %s1570 = scalar_lea.sflag [#allocation4], %s1569
          %s1571 = sand.u32 %s120, 1
          %s1572 = smul.addr %s1571, 25
          %s1573 = scalar_lea.vmem [#allocation7], %s1572
          %1574 = dma.done %s1570, 400
        $region52: #{tpu_custom_call.1} parent=47 // pred_fallthru
          _
      $region48: #{tpu_custom_call.1} parent=5 // pred_fallthru
        _
    $region6: #{tpu_custom_call.1} parent=1 // loop_footer
      %s21 = sadd.s32 1, %s17
    $region7: #{tpu_custom_call.1} parent=1 // loop_footer_branch
      %16 = sbr.rel target = $region3
    $region8: #{tpu_custom_call.1} parent=1 // loop_exit
      _
    %1575 = vsyncpa [#allocation3], 1
    %s1576 = scalar_lea.sflag [#allocation3], 1
    %1577 = vsyncpa %s1576, 1
    %1578 = vsyncpa [#allocation6], 1
    %s1579 = scalar_lea.sflag [#allocation6], 1
    %1580 = vsyncpa %s1579, 1
    %1581 = vsyncpa [#allocation4], 1
    %s1582 = scalar_lea.sflag [#allocation4], 1
    %1583 = vsyncpa %s1582, 1

</llo_original>
